<compile_context>
chip_gen: v6e
topology: v6e:2x2x1
jax: 0.10.0
libtpu: 0.0.40
codegen_flags: <defaults>
</compile_context>

<pallas_src>
import jax
import jax.numpy as jnp
from jax import lax
from jax.experimental import pallas as pl
from jax.experimental.pallas import tpu as pltpu


# --------------------------------------------------------------------------- #
# Kernel
# --------------------------------------------------------------------------- #
def complex_kernel(e1r_ref, e1i_ref, rr_ref, ri_ref, tab_ref, out_ref):
    # e1r/e1i/rr/ri: (B, D)  f32 query tiles, resident across the grid.
    # tab:           (TN, 2D) bf16 tile of the fused [E_real | E_img] table.
    # out:           (B, TN) f32 tile of the prediction matrix.
    e1r = e1r_ref[...]
    e1i = e1i_ref[...]
    rr = rr_ref[...]
    ri = ri_ref[...]

    # Recombine the four ComplEx terms in f32 (right order for cancellation),
    # then cast once so the MXU sees a bf16 x bf16 contraction.
    x_real = e1r * rr - e1i * ri                      # pairs with E_real
    x_img = e1r * ri + e1i * rr                       # pairs with E_img
    x = jnp.concatenate([x_real, x_img], axis=1).astype(tab_ref.dtype)  # (B, 2D)

    # Contract dim 1 of both operands directly — no (tn, 2D) transpose needed.
    dn = (((1,), (1,)), ((), ()))
    logits = lax.dot_general(x, tab_ref[...], dimension_numbers=dn,
                             preferred_element_type=jnp.float32)  # (B, TN)

    out_ref[...] = jax.nn.sigmoid(logits).astype(out_ref.dtype)


# --------------------------------------------------------------------------- #
# Init-time preparation (done ONCE, not per forward call)
# --------------------------------------------------------------------------- #
def pick_entity_tile(num_entities, *, tn_max=2048, tn_min=256, min_grid=8):
    """Entity-tile size: as big as possible (<= tn_max) while keeping
    >= min_grid grid steps so v7x's two TensorCores both stream tiles."""
    tn = pl.cdiv(num_entities, min_grid)
    tn = ((tn + tn_min - 1) // tn_min) * tn_min   # round up to multiple of tn_min
    return max(tn_min, min(tn, tn_max))


def prepare_complex_entity_table(emb_e_real, emb_e_img, *, tn,
                                 table_dtype=jnp.bfloat16):
    """Build the fused, tile-padded (N_pad, 2D) bf16 entity table once.

    Padded rows are zero -> sigmoid(0)=0.5 scores, sliced off after the kernel.
    """
    N, D = emb_e_real.shape
    table = jnp.concatenate([emb_e_real, emb_e_img], axis=1).astype(table_dtype)
    n_pad = (-N) % tn
    if n_pad:
        table = jnp.pad(table, ((0, n_pad), (0, 0)))
    return table  # (N + n_pad, 2D)


# --------------------------------------------------------------------------- #
# Forward
# --------------------------------------------------------------------------- #
def complex_forward(e1_real, e1_img, rel_real, rel_img, entity_table,
                    num_entities, *, tn):
    """ComplEx scoring.

    e1_real/e1_img/rel_real/rel_img: (B, D) gathered embeddings.
    entity_table: (N_pad, 2D) fused bf16 table from prepare_complex_entity_table.
    Returns (B, num_entities) f32 sigmoid scores.
    """
    B, D = e1_real.shape
    n_padded, two_d = entity_table.shape
    assert two_d == 2 * D and n_padded % tn == 0

    e1_real = e1_real.astype(jnp.float32)
    e1_img = e1_img.astype(jnp.float32)
    rel_real = rel_real.astype(jnp.float32)
    rel_img = rel_img.astype(jnp.float32)

    grid = (n_padded // tn,)
    out = pl.pallas_call(
        complex_kernel,
        out_shape=jax.ShapeDtypeStruct((B, n_padded), jnp.float32),
        grid_spec=pltpu.PrefetchScalarGridSpec(
            num_scalar_prefetch=0,
            grid=grid,
            in_specs=[
                pl.BlockSpec((B, D), lambda j: (0, 0)),        # e1 real (resident)
                pl.BlockSpec((B, D), lambda j: (0, 0)),        # e1 imag (resident)
                pl.BlockSpec((B, D), lambda j: (0, 0)),        # rel real (resident)
                pl.BlockSpec((B, D), lambda j: (0, 0)),        # rel imag (resident)
                pl.BlockSpec((tn, 2 * D), lambda j: (j, 0)),   # fused table tile
            ],
            out_specs=pl.BlockSpec((B, tn), lambda j: (0, j)),
        ),
        compiler_params=pltpu.CompilerParams(
            dimension_semantics=("parallel",),
        ),
    )(e1_real, e1_img, rel_real, rel_img, entity_table)

    # Keep the padded-row slice adjacent to the kernel call (padded entities
    # score sigmoid(0)=0.5 and must never reach downstream argmax/ranking).
    return out[:, :num_entities] if n_padded != num_entities else out


# --------------------------------------------------------------------------- #
# Helpers for the self-test
# --------------------------------------------------------------------------- #
def xavier_normal(key, shape):
    fan_out, fan_in = shape  # Embedding weight: (num_embeddings, embedding_dim)
    std = (2.0 / (fan_in + fan_out)) ** 0.5
    return std * jax.random.normal(key, shape, dtype=jnp.float32)


if __name__ == "__main__":
    # Small deterministic config. num_entities deliberately NOT a multiple of
    # the tile so the padding path is exercised; pick_entity_tile keeps >= 4
    # grid steps at this toy size (and picks tn=2048 at production sizes).
    num_entities = 1000
    num_relations = 32
    embedding_dim = 128
    batch = 8

    root = jax.random.PRNGKey(0)
    k_er, k_ei, k_rr, k_ri, k_e1, k_rel = jax.random.split(root, 6)

    # Parameters (xavier_normal_ init, padding_idx=0 row zeroed as in nn.Embedding).
    emb_e_real = xavier_normal(k_er, (num_entities, embedding_dim)).at[0].set(0.0)
    emb_e_img = xavier_normal(k_ei, (num_entities, embedding_dim)).at[0].set(0.0)
    emb_rel_real = xavier_normal(k_rr, (num_relations, embedding_dim)).at[0].set(0.0)
    emb_rel_img = xavier_normal(k_ri, (num_relations, embedding_dim)).at[0].set(0.0)

    # Init-time (one-off) preparation of the fused bf16 entity table.
    tn = pick_entity_tile(num_entities)
    entity_table = jax.block_until_ready(
        prepare_complex_entity_table(emb_e_real, emb_e_img, tn=tn))

    # Inputs: entity / relation index vectors (the .squeeze() in the reference
    # collapses the trailing singleton dim, so indices are effectively (B,)).
    e1 = jax.random.randint(k_e1, (batch,), 0, num_entities, dtype=jnp.int32)
    rel = jax.random.randint(k_rel, (batch,), 0, num_relations, dtype=jnp.int32)

    # Glue: embedding lookups (row gathers) in plain JAX.
    e1_r = emb_e_real[e1]        # (B, D)
    e1_i = emb_e_img[e1]         # (B, D)
    rel_r = emb_rel_real[rel]    # (B, D)
    rel_i = emb_rel_img[rel]     # (B, D)

    pred = complex_forward(e1_r, e1_i, rel_r, rel_i, entity_table,
                           num_entities, tn=tn)
    jax.block_until_ready(pred)

    # Pure-JAX f32 reference (kernel streams the fused table in bf16, so the
    # tolerance is loosened accordingly; logits are small so the error is tiny).
    ref_logits = ((e1_r * rel_r) @ emb_e_real.T
                  + (e1_r * rel_i) @ emb_e_img.T
                  + (e1_i * rel_r) @ emb_e_img.T
                  - (e1_i * rel_i) @ emb_e_real.T)
    ref = jax.nn.sigmoid(ref_logits)

    assert pred.shape == (batch, num_entities)
    assert jnp.allclose(pred, ref, atol=2e-2), "mismatch vs reference"

    print("KERNEL_OK")
</pallas_src>

<mosaic_0001>
module attributes {stable_mosaic.version = 11 : i64} {
  func.func @complex_kernel(%arg0: i32, %arg1: memref<8x128xf32, #tpu.memory_space<vmem>>, %arg2: memref<8x128xf32, #tpu.memory_space<vmem>>, %arg3: memref<8x128xf32, #tpu.memory_space<vmem>>, %arg4: memref<8x128xf32, #tpu.memory_space<vmem>>, %arg5: memref<256x256xbf16, #tpu.memory_space<vmem>>, %arg6: memref<8x256xf32, #tpu.memory_space<vmem>>) attributes {dimension_semantics = [#tpu.dimension_semantics<parallel>], iteration_bounds = array<i64: 4>, scalar_prefetch = 0 : i64, scratch_operands = 0 : i64, tpu.core_type = #tpu.core_type<tc>, window_params = [{pipeline_mode = #tpu.pipeline_mode<synchronous>, transform_indices = @transform_0, window_bounds = array<i64: 8, 128>}, {pipeline_mode = #tpu.pipeline_mode<synchronous>, transform_indices = @transform_1, window_bounds = array<i64: 8, 128>}, {pipeline_mode = #tpu.pipeline_mode<synchronous>, transform_indices = @transform_2, window_bounds = array<i64: 8, 128>}, {pipeline_mode = #tpu.pipeline_mode<synchronous>, transform_indices = @transform_3, window_bounds = array<i64: 8, 128>}, {transform_indices = @transform_4, window_bounds = array<i64: 256, 256>}, {transform_indices = @transform_5, window_bounds = array<i64: 8, 256>}]} {
    %c0 = arith.constant 0 : index
    %c0_0 = arith.constant 0 : index
    %0 = vector.load %arg1[%c0, %c0_0] : memref<8x128xf32, #tpu.memory_space<vmem>>, vector<8x128xf32>
    %c0_1 = arith.constant 0 : index
    %c0_2 = arith.constant 0 : index
    %1 = vector.load %arg2[%c0_1, %c0_2] : memref<8x128xf32, #tpu.memory_space<vmem>>, vector<8x128xf32>
    %c0_3 = arith.constant 0 : index
    %c0_4 = arith.constant 0 : index
    %2 = vector.load %arg3[%c0_3, %c0_4] : memref<8x128xf32, #tpu.memory_space<vmem>>, vector<8x128xf32>
    %c0_5 = arith.constant 0 : index
    %c0_6 = arith.constant 0 : index
    %3 = vector.load %arg4[%c0_5, %c0_6] : memref<8x128xf32, #tpu.memory_space<vmem>>, vector<8x128xf32>
    %4 = arith.mulf %0, %2 : vector<8x128xf32>
    %5 = arith.mulf %1, %3 : vector<8x128xf32>
    %6 = arith.subf %4, %5 : vector<8x128xf32>
    %7 = arith.mulf %0, %3 : vector<8x128xf32>
    %8 = arith.mulf %1, %2 : vector<8x128xf32>
    %9 = arith.addf %7, %8 : vector<8x128xf32>
    %10 = tpu.concatenate %6, %9 in 1 : vector<8x128xf32>, vector<8x128xf32> -> vector<8x256xf32>
    %11 = arith.truncf %10 : vector<8x256xf32> to vector<8x256xbf16>
    %c0_7 = arith.constant 0 : index
    %c0_8 = arith.constant 0 : index
    %12 = vector.load %arg5[%c0_7, %c0_8] : memref<256x256xbf16, #tpu.memory_space<vmem>>, vector<256x256xbf16>
    %cst = arith.constant dense<0.000000e+00> : vector<8x256xf32>
    %13 = tpu.matmul %11, %12, %cst {dimension_numbers = #tpu.dot_dimension_numbers<[1], [1], [0], [0], [0, 0, 1, 0], [], []>} : vector<8x256xbf16>, vector<256x256xbf16>, vector<8x256xf32> -> vector<8x256xf32>
    %14 = arith.negf %13 : vector<8x256xf32>
    %15 = math.exp %14 : vector<8x256xf32>
    %cst_9 = arith.constant 1.000000e+00 : f32
    %16 = vector.broadcast %cst_9 : f32 to vector<8x256xf32>
    %17 = arith.addf %16, %15 : vector<8x256xf32>
    %18 = arith.divf %16, %17 : vector<8x256xf32>
    %c0_10 = arith.constant 0 : index
    %c0_11 = arith.constant 0 : index
    %19 = vector.load %arg6[%c0_10, %c0_11] : memref<8x256xf32, #tpu.memory_space<vmem>>, vector<8x256xf32>
    tpu.vector_store %arg6[%c0_10, %c0_11], %18 {strides = array<i32>} : memref<8x256xf32, #tpu.memory_space<vmem>>, vector<8x256xf32>,
    return
  }
  func.func @transform_0(%arg0: i32) -> (i32, i32) {
    %c0_i32 = arith.constant 0 : i32
    %c0_i32_0 = arith.constant 0 : i32
    %c0_i32_1 = arith.constant 0 : i32
    return %c0_i32, %c0_i32_0 : i32, i32
  }
  func.func @transform_1(%arg0: i32) -> (i32, i32) {
    %c0_i32 = arith.constant 0 : i32
    %c0_i32_0 = arith.constant 0 : i32
    %c0_i32_1 = arith.constant 0 : i32
    return %c0_i32, %c0_i32_0 : i32, i32
  }
  func.func @transform_2(%arg0: i32) -> (i32, i32) {
    %c0_i32 = arith.constant 0 : i32
    %c0_i32_0 = arith.constant 0 : i32
    %c0_i32_1 = arith.constant 0 : i32
    return %c0_i32, %c0_i32_0 : i32, i32
  }
  func.func @transform_3(%arg0: i32) -> (i32, i32) {
    %c0_i32 = arith.constant 0 : i32
    %c0_i32_0 = arith.constant 0 : i32
    %c0_i32_1 = arith.constant 0 : i32
    return %c0_i32, %c0_i32_0 : i32, i32
  }
  func.func @transform_4(%arg0: i32) -> (i32, i32) {
    %c0_i32 = arith.constant 0 : i32
    %c0_i32_0 = arith.constant 0 : i32
    return %arg0, %c0_i32 : i32, i32
  }
  func.func @transform_5(%arg0: i32) -> (i32, i32) {
    %c0_i32 = arith.constant 0 : i32
    %c0_i32_0 = arith.constant 0 : i32
    return %c0_i32, %arg0 : i32, i32
  }
}

</mosaic_0001>

<llo_original>
// kernel: tpu_custom_call.1
$region0: #{tpu_custom_call.1}
  #allocation0 [shape = 'u32[]', space=smem, size = 0x4, offset = 0x4, fixed_abs, tag = 'smem constant byte address 0x4 - core index']
  #allocation1 [shape = 'u32[144,128]{1,0:T(1,128)}', space=vmem, size = 0x12000, scoped, tag = 'internal scratch']
  %s0 = inlined_call_operand.hbm [shape: f32[8,128], index: 0, kind: input, shape index: {}]
  %s1 = inlined_call_operand.hbm [shape: f32[8,128], index: 1, kind: input, shape index: {}]
  %s2 = inlined_call_operand.hbm [shape: f32[8,128], index: 2, kind: input, shape index: {}]
  %s3 = inlined_call_operand.hbm [shape: f32[8,128], index: 3, kind: input, shape index: {}]
  %s4 = inlined_call_operand.hbm [shape: bf16[1024,256], index: 4, kind: input, shape index: {}]
  %s5 = inlined_call_operand.hbm [shape: f32[8,1024], index: 5, kind: output, shape index: {}]
  %s6 = sld [smem:[#allocation0]]
  $region73: #{tpu_custom_call.1} parent=0
    _
  %s8 = ssub.s32 1, %s6
  %s9 = scalar_select 0, %s8, %s6
  $region1: #{tpu_custom_call.1} parent=0
    #allocation2 [shape = 'u8[4096]{0}', space=vmem, size = 0x1000, scoped, tag = 'input window, operand 0, single buffered']
    #allocation3 [shape = 's32[2]{0}', space=sflag, size = 0x8, scoped, tag = 'scoped memory for tpu_custom_call.1']
    #allocation4 [shape = 's32[2]{0}', space=sflag, size = 0x8, scoped, tag = 'scoped memory for tpu_custom_call.1']
    #allocation5 [shape = 'u8[4096]{0}', space=vmem, size = 0x1000, scoped, tag = 'input window, operand 1, single buffered']
    #allocation6 [shape = 's32[1]{0}', space=sflag, size = 0x4, scoped, tag = 'scoped memory for tpu_custom_call.1']
    #allocation7 [shape = 'u8[4096]{0}', space=vmem, size = 0x1000, scoped, tag = 'input window, operand 2, single buffered']
    #allocation8 [shape = 'u8[4096]{0}', space=vmem, size = 0x1000, scoped, tag = 'input window, operand 3, single buffered']
    #allocation9 [shape = 's32[1]{0}', space=sflag, size = 0x4, scoped, tag = 'scoped memory for tpu_custom_call.1']
    #allocation10 [shape = 'u8[262144]{0}', space=vmem, size = 0x40000, scoped, tag = 'input window, operand 4']
    #allocation11 [shape = 'u8[16384]{0}', space=vmem, size = 0x4000, scoped, tag = 'output window, operand 0']
    %10 = vsyncpa [#allocation3], 0
    %11 = vsyncpa [#allocation6], 0
    %12 = vsyncpa [#allocation9], 0
    %13 = vsyncpa [#allocation4], 0
    %s14 = scalar_lea.sflag [#allocation4], 1
    %15 = vsyncpa %s14, 0
    loop: start=0, step=1, limit=6
    $region2: #{tpu_custom_call.1} parent=1 // loop_pre_header
      _
    $region3: #{tpu_custom_call.1} parent=1 // loop_header
      %s17 = sphi 0, %s21
      %p18 = scmp.ge.s32.totalorder %s17, 6
      %s25 = sphi 0, %s25
      %s27 = sphi 0, %s25
      %s28 = sphi 0, %s27
      %s42 = sphi 0, %s28
      %s46 = sphi 0, %s46
      %s48 = sphi 0, %s46
      %s49 = sphi 0, %s48
      %s63 = sphi 0, %s49
      %s67 = sphi 0, %s67
      %s69 = sphi 0, %s67
      %s70 = sphi 0, %s69
      %s84 = sphi 0, %s70
      %s88 = sphi 0, %s88
      %s90 = sphi 0, %s88
      %s91 = sphi 0, %s90
      %s105 = sphi 0, %s91
      %s111 = sphi 0, %s113
      %s114 = sphi 0, %s111
      %s115 = sphi 0, %s114
      %s131 = sphi 0, %s115
      %s137 = sphi 0, %s139
      %s140 = sphi 0, %s137
      %s141 = sphi 0, %s140
      %s157 = sphi 0, %s141
    $region4: #{tpu_custom_call.1} parent=1 // loop_header_branch
      %20 = sbr.rel (%p18) target = $region8
    $region5: #{tpu_custom_call.1} parent=1 // loop_body
      %s22 = ssub.s32 %s17, 1
      %s23 = ssub.s32 %s17, 2
      %s24 = sadd.s32 %s17, 1
      %s26 = sadd.s32 %s25, 1
      %p29 = scmp.eq.s32.totalorder %s17, 3
      %p30 = scmp.ne.s32.totalorder %s25, %s27
      %p31 = scmp.eq.s32.totalorder %s17, 0
      %p32 = por %p30, %p31
      %p33 = scmp.ne.s32.totalorder %s25, %s27
      %p34 = scmp.eq.s32.totalorder %s22, 3
      %p35 = por %p33, %p34
      %p36 = scmp.ne.s32.totalorder %s27, %s28
      %p37 = scmp.eq.s32.totalorder %s22, 0
      %p38 = por %p36, %p37
      %p39 = scmp.ne.s32.totalorder %s27, %s28
      %p40 = scmp.eq.s32.totalorder %s23, 3
      %p41 = por %p39, %p40
      %p43 = scmp.ne.s32.totalorder %s28, %s42
      %p44 = scmp.eq.s32.totalorder %s23, 0
      %p45 = por %p43, %p44
      %s47 = sadd.s32 %s46, 1
      %p50 = scmp.eq.s32.totalorder %s17, 3
      %p51 = scmp.ne.s32.totalorder %s46, %s48
      %p52 = scmp.eq.s32.totalorder %s17, 0
      %p53 = por %p51, %p52
      %p54 = scmp.ne.s32.totalorder %s46, %s48
      %p55 = scmp.eq.s32.totalorder %s22, 3
      %p56 = por %p54, %p55
      %p57 = scmp.ne.s32.totalorder %s48, %s49
      %p58 = scmp.eq.s32.totalorder %s22, 0
      %p59 = por %p57, %p58
      %p60 = scmp.ne.s32.totalorder %s48, %s49
      %p61 = scmp.eq.s32.totalorder %s23, 3
      %p62 = por %p60, %p61
      %p64 = scmp.ne.s32.totalorder %s49, %s63
      %p65 = scmp.eq.s32.totalorder %s23, 0
      %p66 = por %p64, %p65
      %s68 = sadd.s32 %s67, 1
      %p71 = scmp.eq.s32.totalorder %s17, 3
      %p72 = scmp.ne.s32.totalorder %s67, %s69
      %p73 = scmp.eq.s32.totalorder %s17, 0
      %p74 = por %p72, %p73
      %p75 = scmp.ne.s32.totalorder %s67, %s69
      %p76 = scmp.eq.s32.totalorder %s22, 3
      %p77 = por %p75, %p76
      %p78 = scmp.ne.s32.totalorder %s69, %s70
      %p79 = scmp.eq.s32.totalorder %s22, 0
      %p80 = por %p78, %p79
      %p81 = scmp.ne.s32.totalorder %s69, %s70
      %p82 = scmp.eq.s32.totalorder %s23, 3
      %p83 = por %p81, %p82
      %p85 = scmp.ne.s32.totalorder %s70, %s84
      %p86 = scmp.eq.s32.totalorder %s23, 0
      %p87 = por %p85, %p86
      %s89 = sadd.s32 %s88, 1
      %p92 = scmp.eq.s32.totalorder %s17, 3
      %p93 = scmp.ne.s32.totalorder %s88, %s90
      %p94 = scmp.eq.s32.totalorder %s17, 0
      %p95 = por %p93, %p94
      %p96 = scmp.ne.s32.totalorder %s88, %s90
      %p97 = scmp.eq.s32.totalorder %s22, 3
      %p98 = por %p96, %p97
      %p99 = scmp.ne.s32.totalorder %s90, %s91
      %p100 = scmp.eq.s32.totalorder %s22, 0
      %p101 = por %p99, %p100
      %p102 = scmp.ne.s32.totalorder %s90, %s91
      %p103 = scmp.eq.s32.totalorder %s23, 3
      %p104 = por %p102, %p103
      %p106 = scmp.ne.s32.totalorder %s91, %s105
      %p107 = scmp.eq.s32.totalorder %s23, 0
      %p108 = por %p106, %p107
      %s109 = ssub.s32 %s17, %s24
      %p110 = scmp.eq.s32.totalorder %s109, 0
      %s112 = sadd.s32 %s111, 1
      %s113 = scalar_select %p110, %s111, %s112
      %p116 = pneg %p110
      %p117 = scmp.eq.s32.totalorder %s17, 3
      %p118 = por %p116, %p117
      %p119 = scmp.ne.s32.totalorder %s111, %s114
      %p120 = scmp.eq.s32.totalorder %s17, 0
      %p121 = por %p119, %p120
      %p122 = scmp.ne.s32.totalorder %s111, %s114
      %p123 = scmp.eq.s32.totalorder %s22, 3
      %p124 = por %p122, %p123
      %p125 = scmp.ne.s32.totalorder %s114, %s115
      %p126 = scmp.eq.s32.totalorder %s22, 0
      %p127 = por %p125, %p126
      %p128 = scmp.ne.s32.totalorder %s114, %s115
      %p129 = scmp.eq.s32.totalorder %s23, 3
      %p130 = por %p128, %p129
      %p132 = scmp.ne.s32.totalorder %s115, %s131
      %p133 = scmp.eq.s32.totalorder %s23, 0
      %p134 = por %p132, %p133
      %s135 = ssub.s32 %s17, %s24
      %p136 = scmp.eq.s32.totalorder %s135, 0
      %s138 = sadd.s32 %s137, 1
      %s139 = scalar_select %p136, %s137, %s138
      %p142 = pneg %p136
      %p143 = scmp.eq.s32.totalorder %s17, 3
      %p144 = por %p142, %p143
      %p145 = scmp.ne.s32.totalorder %s137, %s140
      %p146 = scmp.eq.s32.totalorder %s17, 0
      %p147 = por %p145, %p146
      %p148 = scmp.ne.s32.totalorder %s137, %s140
      %p149 = scmp.eq.s32.totalorder %s22, 3
      %p150 = por %p148, %p149
      %p151 = scmp.ne.s32.totalorder %s140, %s141
      %p152 = scmp.eq.s32.totalorder %s22, 0
      %p153 = por %p151, %p152
      %p154 = scmp.ne.s32.totalorder %s140, %s141
      %p155 = scmp.eq.s32.totalorder %s23, 3
      %p156 = por %p154, %p155
      %p158 = scmp.ne.s32.totalorder %s141, %s157
      %p159 = scmp.eq.s32.totalorder %s23, 0
      %p160 = por %p158, %p159
      %p161 = scmp.le.s32.totalorder 1, %s17
      %p162 = scmp.lt.s32.totalorder %s17, 5
      %p163 = pnand %p161, %p162
      %p164 = pneg %p163
      // Predicated region
      $region9: #{tpu_custom_call.1} parent=5 // pred_check
        _
      $region10: #{tpu_custom_call.1} parent=5 // pred_check_branch
        %166 = sbr.rel (%p163) target = $region12
      $region11: #{tpu_custom_call.1} parent=5 // pred_region
        %s167 = ssub.s32 %s17, 1
        // Predicated region
        $region13: #{tpu_custom_call.1} parent=11 // pred_check
          %p168 = pneg %p38
        $region14: #{tpu_custom_call.1} parent=11 // pred_check_branch
          %170 = sbr.rel (%p168) target = $region16
        $region15: #{tpu_custom_call.1} parent=11 // pred_region
          %s172 = ssub.s32 128, 128
          %173 = vsyncadd [#allocation3], %s172
          %s175 = sshll.u32 [#allocation2], 4
          %s176 = int_to_ptr.vmem [resolvable:$true] %s175
          %178 = dma.hbm_to_vmem [thread:$0]  %s0, 128, %s176, [#allocation3]
        $region16: #{tpu_custom_call.1} parent=11 // pred_fallthru
          _
        // Predicated region
        $region17: #{tpu_custom_call.1} parent=11 // pred_check
          %p179 = pneg %p59
        $region18: #{tpu_custom_call.1} parent=11 // pred_check_branch
          %181 = sbr.rel (%p179) target = $region20
        $region19: #{tpu_custom_call.1} parent=11 // pred_region
          %s183 = ssub.s32 128, 128
          %184 = vsyncadd [#allocation6], %s183
          %s186 = sshll.u32 [#allocation5], 4
          %s187 = int_to_ptr.vmem [resolvable:$true] %s186
          %189 = dma.hbm_to_vmem [thread:$0]  %s1, 128, %s187, [#allocation6]
        $region20: #{tpu_custom_call.1} parent=11 // pred_fallthru
          _
        // Predicated region
        $region21: #{tpu_custom_call.1} parent=11 // pred_check
          %p190 = pneg %p80
        $region22: #{tpu_custom_call.1} parent=11 // pred_check_branch
          %192 = sbr.rel (%p190) target = $region24
        $region23: #{tpu_custom_call.1} parent=11 // pred_region
          %s194 = ssub.s32 128, 128
          %195 = vsyncadd [#allocation6], %s194
          %s197 = sshll.u32 [#allocation7], 4
          %s198 = int_to_ptr.vmem [resolvable:$true] %s197
          %200 = dma.hbm_to_vmem [thread:$0]  %s2, 128, %s198, [#allocation6]
        $region24: #{tpu_custom_call.1} parent=11 // pred_fallthru
          _
        // Predicated region
        $region25: #{tpu_custom_call.1} parent=11 // pred_check
          %p201 = pneg %p101
        $region26: #{tpu_custom_call.1} parent=11 // pred_check_branch
          %203 = sbr.rel (%p201) target = $region28
        $region27: #{tpu_custom_call.1} parent=11 // pred_region
          %s205 = ssub.s32 128, 128
          %206 = vsyncadd [#allocation9], %s205
          %s208 = sshll.u32 [#allocation8], 4
          %s209 = int_to_ptr.vmem [resolvable:$true] %s208
          %211 = dma.hbm_to_vmem [thread:$0]  %s3, 128, %s209, [#allocation9]
        $region28: #{tpu_custom_call.1} parent=11 // pred_fallthru
          _
      $region12: #{tpu_custom_call.1} parent=5 // pred_fallthru
        _
      %p212 = scmp.lt.s32.totalorder %s17, 4
      // Predicated region
      $region29: #{tpu_custom_call.1} parent=5 // pred_check
        %p213 = pneg %p212
      $region30: #{tpu_custom_call.1} parent=5 // pred_check_branch
        %215 = sbr.rel (%p213) target = $region32
      $region31: #{tpu_custom_call.1} parent=5 // pred_region
        // Predicated region
        $region33: #{tpu_custom_call.1} parent=31 // pred_check
          %p216 = pneg %p121
        $region34: #{tpu_custom_call.1} parent=31 // pred_check_branch
          %218 = sbr.rel (%p216) target = $region36
        $region35: #{tpu_custom_call.1} parent=31 // pred_region
          %s219 = sand.u32 %s17, 1
          %s220 = scalar_lea.sflag [#allocation3], %s219
          %s221 = sand.u32 %s111, 1
          %s222 = smul.addr %s221, 256
          %s223 = scalar_lea.vmem [#allocation10], %s222
          %s224 = smul.u32 32, %s17
          %s226 = ssub.s32 4096, 4096
          %227 = vsyncadd %s220, %s226
          %s228 = smul.addr %s224, 2
          %s229 = smul.addr %s228, 64
          %s230 = scalar_lea.hbm %s4, %s229
          %s231 = sshll.u32 %s223, 4
          %s232 = int_to_ptr.vmem [resolvable:$true] %s231
          %237 = dma.hbm_to_vmem [thread:$0]  %s230, 4096, %s232, %s220, 128, 128, 8
        $region36: #{tpu_custom_call.1} parent=31 // pred_fallthru
          _
      $region32: #{tpu_custom_call.1} parent=5 // pred_fallthru
        _
      %p238 = scmp.le.s32.totalorder 1, %s17
      %p239 = scmp.lt.s32.totalorder %s17, 5
      %p240 = pnand %p238, %p239
      %p241 = pneg %p240
      // Predicated region
      $region37: #{tpu_custom_call.1} parent=5 // pred_check
        _
      $region38: #{tpu_custom_call.1} parent=5 // pred_check_branch
        %243 = sbr.rel (%p240) target = $region40
      $region39: #{tpu_custom_call.1} parent=5 // pred_region
        %s244 = ssub.s32 %s17, 1
        // Predicated region
        $region41: #{tpu_custom_call.1} parent=39 // pred_check
          %p245 = pneg %p38
        $region42: #{tpu_custom_call.1} parent=39 // pred_check_branch
          %247 = sbr.rel (%p245) target = $region44
        $region43: #{tpu_custom_call.1} parent=39 // pred_region
          %248 = dma.done [#allocation3], 128
        $region44: #{tpu_custom_call.1} parent=39 // pred_fallthru
          _
        // Predicated region
        $region45: #{tpu_custom_call.1} parent=39 // pred_check
          %p249 = pneg %p59
        $region46: #{tpu_custom_call.1} parent=39 // pred_check_branch
          %251 = sbr.rel (%p249) target = $region48
        $region47: #{tpu_custom_call.1} parent=39 // pred_region
          %252 = dma.done [#allocation6], 128
        $region48: #{tpu_custom_call.1} parent=39 // pred_fallthru
          _
        // Predicated region
        $region49: #{tpu_custom_call.1} parent=39 // pred_check
          %p253 = pneg %p80
        $region50: #{tpu_custom_call.1} parent=39 // pred_check_branch
          %255 = sbr.rel (%p253) target = $region52
        $region51: #{tpu_custom_call.1} parent=39 // pred_region
          %256 = dma.done [#allocation6], 128
        $region52: #{tpu_custom_call.1} parent=39 // pred_fallthru
          _
        // Predicated region
        $region53: #{tpu_custom_call.1} parent=39 // pred_check
          %p257 = pneg %p101
        $region54: #{tpu_custom_call.1} parent=39 // pred_check_branch
          %259 = sbr.rel (%p257) target = $region56
        $region55: #{tpu_custom_call.1} parent=39 // pred_region
          %260 = dma.done [#allocation9], 128
        $region56: #{tpu_custom_call.1} parent=39 // pred_fallthru
          _
        %s261 = sand.u32 %s22, 1
        %s262 = scalar_lea.sflag [#allocation3], %s261
        %s263 = sand.u32 %s114, 1
        %s264 = smul.addr %s263, 256
        %s265 = scalar_lea.vmem [#allocation10], %s264
        // Predicated region
        $region57: #{tpu_custom_call.1} parent=39 // pred_check
          %p266 = pneg %p127
        $region58: #{tpu_custom_call.1} parent=39 // pred_check_branch
          %268 = sbr.rel (%p266) target = $region60
        $region59: #{tpu_custom_call.1} parent=39 // pred_region
          %269 = dma.done %s262, 4096
        $region60: #{tpu_custom_call.1} parent=39 // pred_fallthru
          _
        %p270 = pneg %p38
        %p271 = pneg %p35
        %p272 = pneg %p59
        %p273 = pneg %p56
        %p274 = pneg %p80
        %p275 = pneg %p77
        %p276 = pneg %p101
        %p277 = pneg %p98
        %s278 = sand.u32 %s22, 1
        %s279 = scalar_lea.sflag [#allocation3], %s278
        %s280 = sand.u32 %s114, 1
        %s281 = smul.addr %s280, 256
        %s282 = scalar_lea.vmem [#allocation10], %s281
        %p283 = pneg %p127
        %p284 = pneg %p124
        %p285 = pneg %p153
        %p286 = pneg %p150
        %s287 = sand.u32 %s140, 1
        %s288 = scalar_lea.sflag [#allocation4], %s287
        %s289 = sand.u32 %s140, 1
        %s290 = smul.addr %s289, 16
        %s291 = scalar_lea.vmem [#allocation11], %s290
        %s292 = smul.u32 32, %s22
        %s293 = smul.u32 2, %s22
        %v294 = vld [vmem:[#allocation2] sm:$0xff]
        %v295 = vld [vmem:[#allocation5] sm:$0xff]
        %v296 = vld [vmem:[#allocation7] sm:$0xff]
        %v297 = vld [vmem:[#allocation8] sm:$0xff]
        %v298 = vmul.f32 %v294, %v296
        %v299 = vmul.f32 %v295, %v297
        %v300 = vsub.f32 %v298, %v299
        %v301 = vmul.f32 %v294, %v297
        %v302 = vmul.f32 %v295, %v296
        %v303 = vadd.f32 %v301, %v302
        %v304 = vpack.c.bf16 %v300, %v300
        %v305 = vpack.c.bf16 %v303, %v303
        %v306 = vld [vmem:[%s265] sm:$0xff]
        %v307 = vld [vmem:[%s265 + $0x8] sm:$0xff]
        %v308 = vld [vmem:[%s265 + $0x10] sm:$0xff]
        %v309 = vld [vmem:[%s265 + $0x18] sm:$0xff]
        %v310 = vld [vmem:[%s265 + $0x20] sm:$0xff]
        %v311 = vld [vmem:[%s265 + $0x28] sm:$0xff]
        %v312 = vld [vmem:[%s265 + $0x30] sm:$0xff]
        %v313 = vld [vmem:[%s265 + $0x38] sm:$0xff]
        %v314 = vld [vmem:[%s265 + $0x40] sm:$0xff]
        %v315 = vld [vmem:[%s265 + $0x48] sm:$0xff]
        %v316 = vld [vmem:[%s265 + $0x50] sm:$0xff]
        %v317 = vld [vmem:[%s265 + $0x58] sm:$0xff]
        %v318 = vld [vmem:[%s265 + $0x60] sm:$0xff]
        %v319 = vld [vmem:[%s265 + $0x68] sm:$0xff]
        %v320 = vld [vmem:[%s265 + $0x70] sm:$0xff]
        %v321 = vld [vmem:[%s265 + $0x78] sm:$0xff]
        %v322 = vld [vmem:[%s265 + $0x80] sm:$0xff]
        %v323 = vld [vmem:[%s265 + $0x88] sm:$0xff]
        %v324 = vld [vmem:[%s265 + $0x90] sm:$0xff]
        %v325 = vld [vmem:[%s265 + $0x98] sm:$0xff]
        %v326 = vld [vmem:[%s265 + $0xa0] sm:$0xff]
        %v327 = vld [vmem:[%s265 + $0xa8] sm:$0xff]
        %v328 = vld [vmem:[%s265 + $0xb0] sm:$0xff]
        %v329 = vld [vmem:[%s265 + $0xb8] sm:$0xff]
        %v330 = vld [vmem:[%s265 + $0xc0] sm:$0xff]
        %v331 = vld [vmem:[%s265 + $0xc8] sm:$0xff]
        %v332 = vld [vmem:[%s265 + $0xd0] sm:$0xff]
        %v333 = vld [vmem:[%s265 + $0xd8] sm:$0xff]
        %v334 = vld [vmem:[%s265 + $0xe0] sm:$0xff]
        %v335 = vld [vmem:[%s265 + $0xe8] sm:$0xff]
        %v336 = vld [vmem:[%s265 + $0xf0] sm:$0xff]
        %v337 = vld [vmem:[%s265 + $0xf8] sm:$0xff]
        %v370 = vunpack.c.l.b16 %v306
        %v371 = vunpack.c.h.b16 %v306
        %v372 = vunpack.c.l.b16 %v307
        %v373 = vunpack.c.h.b16 %v307
        %v374 = vunpack.c.l.b16 %v308
        %v375 = vunpack.c.h.b16 %v308
        %v376 = vunpack.c.l.b16 %v309
        %v377 = vunpack.c.h.b16 %v309
        %v378 = vunpack.c.l.b16 %v310
        %v379 = vunpack.c.h.b16 %v310
        %v380 = vunpack.c.l.b16 %v311
        %v381 = vunpack.c.h.b16 %v311
        %v382 = vunpack.c.l.b16 %v312
        %v383 = vunpack.c.h.b16 %v312
        %v384 = vunpack.c.l.b16 %v313
        %v385 = vunpack.c.h.b16 %v313
        %v386 = vunpack.c.l.b16 %v314
        %v387 = vunpack.c.h.b16 %v314
        %v388 = vunpack.c.l.b16 %v315
        %v389 = vunpack.c.h.b16 %v315
        %v390 = vunpack.c.l.b16 %v316
        %v391 = vunpack.c.h.b16 %v316
        %v392 = vunpack.c.l.b16 %v317
        %v393 = vunpack.c.h.b16 %v317
        %v394 = vunpack.c.l.b16 %v318
        %v395 = vunpack.c.h.b16 %v318
        %v396 = vunpack.c.l.b16 %v319
        %v397 = vunpack.c.h.b16 %v319
        %v398 = vunpack.c.l.b16 %v320
        %v399 = vunpack.c.h.b16 %v320
        %v400 = vunpack.c.l.b16 %v321
        %v401 = vunpack.c.h.b16 %v321
        %v402 = vunpack.c.l.b16 %v322
        %v403 = vunpack.c.h.b16 %v322
        %v404 = vunpack.c.l.b16 %v323
        %v405 = vunpack.c.h.b16 %v323
        %v406 = vunpack.c.l.b16 %v324
        %v407 = vunpack.c.h.b16 %v324
        %v408 = vunpack.c.l.b16 %v325
        %v409 = vunpack.c.h.b16 %v325
        %v410 = vunpack.c.l.b16 %v326
        %v411 = vunpack.c.h.b16 %v326
        %v412 = vunpack.c.l.b16 %v327
        %v413 = vunpack.c.h.b16 %v327
        %v414 = vunpack.c.l.b16 %v328
        %v415 = vunpack.c.h.b16 %v328
        %v416 = vunpack.c.l.b16 %v329
        %v417 = vunpack.c.h.b16 %v329
        %v418 = vunpack.c.l.b16 %v330
        %v419 = vunpack.c.h.b16 %v330
        %v420 = vunpack.c.l.b16 %v331
        %v421 = vunpack.c.h.b16 %v331
        %v422 = vunpack.c.l.b16 %v332
        %v423 = vunpack.c.h.b16 %v332
        %v424 = vunpack.c.l.b16 %v333
        %v425 = vunpack.c.h.b16 %v333
        %v426 = vunpack.c.l.b16 %v334
        %v427 = vunpack.c.h.b16 %v334
        %v428 = vunpack.c.l.b16 %v335
        %v429 = vunpack.c.h.b16 %v335
        %v430 = vunpack.c.l.b16 %v336
        %v431 = vunpack.c.h.b16 %v336
        %v432 = vunpack.c.l.b16 %v337
        %v433 = vunpack.c.h.b16 %v337
        %v434 = vpack.c.b16 %v372, %v370
        %v435 = vpack.c.b16 %v373, %v371
        %v436 = vpack.c.b16 %v376, %v374
        %v437 = vpack.c.b16 %v377, %v375
        %v438 = vpack.c.b16 %v380, %v378
        %v439 = vpack.c.b16 %v381, %v379
        %v440 = vpack.c.b16 %v384, %v382
        %v441 = vpack.c.b16 %v385, %v383
        %v442 = vpack.c.b16 %v388, %v386
        %v443 = vpack.c.b16 %v389, %v387
        %v444 = vpack.c.b16 %v392, %v390
        %v445 = vpack.c.b16 %v393, %v391
        %v446 = vpack.c.b16 %v396, %v394
        %v447 = vpack.c.b16 %v397, %v395
        %v448 = vpack.c.b16 %v400, %v398
        %v449 = vpack.c.b16 %v401, %v399
        %v450 = vpack.c.b16 %v404, %v402
        %v451 = vpack.c.b16 %v405, %v403
        %v452 = vpack.c.b16 %v408, %v406
        %v453 = vpack.c.b16 %v409, %v407
        %v454 = vpack.c.b16 %v412, %v410
        %v455 = vpack.c.b16 %v413, %v411
        %v456 = vpack.c.b16 %v416, %v414
        %v457 = vpack.c.b16 %v417, %v415
        %v458 = vpack.c.b16 %v420, %v418
        %v459 = vpack.c.b16 %v421, %v419
        %v460 = vpack.c.b16 %v424, %v422
        %v461 = vpack.c.b16 %v425, %v423
        %v462 = vpack.c.b16 %v428, %v426
        %v463 = vpack.c.b16 %v429, %v427
        %v464 = vpack.c.b16 %v432, %v430
        %v465 = vpack.c.b16 %v433, %v431
        %498 = vmatprep.subr.bf16.mxu0 %v449
        %499 = vmatpush1.bf16.xpose.msra.mxu0 %v448
        %500 = vmatprep.subr.bf16.mxu0 %v447
        %501 = vmatpush1.bf16.xpose.msra.mxu0 %v446
        %502 = vmatprep.subr.bf16.mxu0 %v445
        %503 = vmatpush1.bf16.xpose.msra.mxu0 %v444
        %504 = vmatprep.subr.bf16.mxu0 %v443
        %505 = vmatpush1.bf16.xpose.msra.mxu0 %v442
        %506 = vmatprep.subr.bf16.mxu0 %v441
        %507 = vmatpush1.bf16.xpose.msra.mxu0 %v440
        %508 = vmatprep.subr.bf16.mxu0 %v439
        %509 = vmatpush1.bf16.xpose.msra.mxu0 %v438
        %510 = vmatprep.subr.bf16.mxu0 %v437
        %511 = vmatpush1.bf16.xpose.msra.mxu0 %v436
        %512 = vmatprep.subr.bf16.mxu0 %v435
        %513 = vmatpush1.bf16.xpose.msra.mxu0 %v434
        %514 = vmatprep.subr.bf16.mxu0 %v465
        %515 = vmatpush2.bf16.xpose.msra.mxu0 %v464
        %516 = vmatprep.subr.bf16.mxu0 %v463
        %517 = vmatpush2.bf16.xpose.msra.mxu0 %v462
        %518 = vmatprep.subr.bf16.mxu0 %v461
        %519 = vmatpush2.bf16.xpose.msra.mxu0 %v460
        %520 = vmatprep.subr.bf16.mxu0 %v459
        %521 = vmatpush2.bf16.xpose.msra.mxu0 %v458
        %522 = vmatprep.subr.bf16.mxu0 %v457
        %523 = vmatpush2.bf16.xpose.msra.mxu0 %v456
        %524 = vmatprep.subr.bf16.mxu0 %v455
        %525 = vmatpush2.bf16.xpose.msra.mxu0 %v454
        %526 = vmatprep.subr.bf16.mxu0 %v453
        %527 = vmatpush2.bf16.xpose.msra.mxu0 %v452
        %528 = vmatprep.subr.bf16.mxu0 %v451
        %529 = vmatpush2.bf16.xpose.msra.mxu0 %v450
        %530 = vmatprep.mubr.bf16.mxu0 %v305
        %531 = vmatmul.mubr.bf16.gmra.mxu0 %v304
        %v532 = vpop.f32.mrf.mxu0
        %v533 = vadd.f32 0.0, %v532
        %v534 = vpop.f32.mrf.mxu0
        %v535 = vadd.f32 0.0, %v534
        %v536 = vpop.f32.mrf.mxu0
        %v537 = vpop.f32.mrf.mxu0
        %538 = vdwg.mxu0
        %v539 = vxor.u32 %v533, 2147483648
        %v540 = vxor.u32 %v535, 2147483648
        %v541 = vmul.f32 %v539, 1.442695
        %v542 = vpow.pop %v541
        %v543 = vmul.f32 %v540, 1.442695
        %v544 = vpow.pop %v543
        %v545 = vadd.f32 %v542, 1.0
        %v546 = vadd.f32 %v544, 1.0
        %v547 = vrcp.pop %v545
        %v548 = vmul.f32 1.0, %v547
        %v549 = vrcp.pop %v546
        %v550 = vmul.f32 1.0, %v549
        %551 = vst [vmem:[%s291] sm:$0xff] %v548
        %552 = vst [vmem:[%s291 + $0x8] sm:$0xff] %v550
        %s553 = sand.u32 %s140, 1
        %s554 = scalar_lea.sflag [#allocation4], %s553
        %s555 = sand.u32 %s140, 1
        %s556 = smul.addr %s555, 16
        %s557 = scalar_lea.vmem [#allocation11], %s556
        // Predicated region
        $region61: #{tpu_custom_call.1} parent=39 // pred_check
          %p558 = pneg %p150
        $region62: #{tpu_custom_call.1} parent=39 // pred_check_branch
          %560 = sbr.rel (%p558) target = $region64
        $region63: #{tpu_custom_call.1} parent=39 // pred_region
          %s561 = smul.u32 2, %s22
          %s563 = ssub.s32 256, 256
          %564 = vsyncadd %s554, %s563
          %s565 = smul.addr %s561, 128
          %s566 = scalar_lea.hbm %s5, %s565
          %s568 = sshll.u32 %s557, 4
          %s569 = int_to_ptr.vmem [resolvable:$true] %s568
          %571 = dma.vmem_to_hbm [thread:$0]  %s569, 256, %s566, %s554
        $region64: #{tpu_custom_call.1} parent=39 // pred_fallthru
          _
      $region40: #{tpu_custom_call.1} parent=5 // pred_fallthru
        _
      %p572 = scmp.le.s32.totalorder 2, %s17
      // Predicated region
      $region65: #{tpu_custom_call.1} parent=5 // pred_check
        %p573 = pneg %p572
      $region66: #{tpu_custom_call.1} parent=5 // pred_check_branch
        %575 = sbr.rel (%p573) target = $region68
      $region67: #{tpu_custom_call.1} parent=5 // pred_region
        %s576 = ssub.s32 %s17, 2
        // Predicated region
        $region69: #{tpu_custom_call.1} parent=67 // pred_check
          %p577 = pneg %p156
        $region70: #{tpu_custom_call.1} parent=67 // pred_check_branch
          %579 = sbr.rel (%p577) target = $region72
        $region71: #{tpu_custom_call.1} parent=67 // pred_region
          %s580 = sand.u32 %s141, 1
          %s581 = scalar_lea.sflag [#allocation4], %s580
          %s582 = sand.u32 %s141, 1
          %s583 = smul.addr %s582, 16
          %s584 = scalar_lea.vmem [#allocation11], %s583
          %585 = dma.done %s581, 256
        $region72: #{tpu_custom_call.1} parent=67 // pred_fallthru
          _
      $region68: #{tpu_custom_call.1} parent=5 // pred_fallthru
        _
    $region6: #{tpu_custom_call.1} parent=1 // loop_footer
      %s21 = sadd.s32 1, %s17
    $region7: #{tpu_custom_call.1} parent=1 // loop_footer_branch
      %16 = sbr.rel target = $region3
    $region8: #{tpu_custom_call.1} parent=1 // loop_exit
      _
    %586 = vsyncpa [#allocation3], 1
    %s587 = scalar_lea.sflag [#allocation3], 1
    %588 = vsyncpa %s587, 1
    %589 = vsyncpa [#allocation6], 1
    %590 = vsyncpa [#allocation9], 1
    %591 = vsyncpa [#allocation4], 1
    %s592 = scalar_lea.sflag [#allocation4], 1
    %593 = vsyncpa %s592, 1

</llo_original>
